<compile_context>
chip_gen: v6e
topology: v6e:2x2x1
jax: 0.10.0
libtpu: 0.0.40
codegen_flags: <defaults>
</compile_context>

<pallas_src>
import jax
import jax.numpy as jnp
from jax.experimental import pallas as pl
from jax.experimental.pallas import tpu as pltpu


def siamese_kernel(x_ref, w_ref, b_ref, wc_ref, bc_ref, out_ref, acc_ref):
    k = pl.program_id(0)

    @pl.when(k == 0)
    def _():
        acc_ref[...] = jnp.zeros_like(acc_ref)

    # Single fused backbone matmul over both stacked branches (shared weight W
    # is pushed through the MXU once per contraction tile, accumulate in f32).
    acc_ref[...] += jnp.dot(x_ref[...], w_ref[...],
                            preferred_element_type=jnp.float32)

    @pl.when(k == pl.num_programs(0) - 1)
    def _():
        batch = out_ref.shape[0]
        feats = acc_ref[...] + b_ref[...]            # (2B, F) f32
        s = jax.nn.sigmoid(feats)
        diff = jnp.abs(s[:batch, :] - s[batch:, :])  # (B, F)
        # F -> 1 classifier as VPU mul + cross-lane reduce (avoids an N=1 MXU
        # matmul and its masked lane-1 result path).
        logits = (jnp.sum(diff * wc_ref[...], axis=-1, keepdims=True)
                  + bc_ref[0, 0])
        out_ref[...] = logits.astype(out_ref.dtype)


def siamese_forward(img1, img2, mean, std, w_backbone, b_backbone, w_cls, b_cls,
                    *, tk=256, compute_dtype=jnp.float32):
    """Forward pass of the Siamese model.

    compute_dtype: dtype of x / backbone-weight operands fed to the MXU.
      f32 (default) reproduces the PyTorch module exactly; bf16 halves the
      weight DMA bytes on v6e/v7x (accumulation stays f32, and the post-matmul
      sigmoid/|diff|/classifier math is always done in f32).
    """
    B, C, H, W = img1.shape
    D = C * H * W
    F = w_backbone.shape[1]

    # ---- fold normalization into the backbone parameters (wrapper, one-time):
    #      ((x - mean) / std) @ W + b  ==  x @ (inv_std * W) + (b - (mean*inv_std) @ W)
    inv_std = (1.0 / jnp.broadcast_to(std[:, None, None], (C, H, W))).reshape(D)
    mean_f = jnp.broadcast_to(mean[:, None, None], (C, H, W)).reshape(D)
    w_fold = inv_std[:, None] * w_backbone                          # (D, F)
    b_fold = (b_backbone - (mean_f * inv_std) @ w_backbone).reshape(1, F)

    # ---- stack both branches so the shared weight is reused in ONE matmul.
    x = jnp.concatenate([img1.reshape(B, D), img2.reshape(B, D)], axis=0)  # (2B, D)

    # ---- tile the contraction dim; pad with zeros if D is not a multiple of tk
    #      (zero rows of W / zero cols of x contribute nothing).
    kt = pl.cdiv(D, tk)
    d_pad = kt * tk
    if d_pad != D:
        x = jnp.pad(x, ((0, 0), (0, d_pad - D)))
        w_fold = jnp.pad(w_fold, ((0, d_pad - D), (0, 0)))

    x = x.astype(compute_dtype)
    w_fold = w_fold.astype(compute_dtype)
    b_fold = b_fold.astype(jnp.float32)
    wc_row = w_cls.reshape(1, F).astype(jnp.float32)
    bc = b_cls.reshape(1, 1).astype(jnp.float32)

    grid_spec = pltpu.PrefetchScalarGridSpec(
        num_scalar_prefetch=0,
        grid=(kt,),
        in_specs=[
            pl.BlockSpec((2 * B, tk), lambda k: (0, k)),   # stacked x1|x2 tile
            pl.BlockSpec((tk, F), lambda k: (k, 0)),        # folded backbone W tile
            pl.BlockSpec((1, F), lambda k: (0, 0)),         # folded backbone bias
            pl.BlockSpec((1, F), lambda k: (0, 0)),         # classifier weight row
            pl.BlockSpec(memory_space=pltpu.MemorySpace.SMEM),  # classifier bias scalar
        ],
        out_specs=pl.BlockSpec((B, 1), lambda k: (0, 0)),
        scratch_shapes=[pltpu.VMEM((2 * B, F), jnp.float32)],   # f32 accumulator
    )

    return pl.pallas_call(
        siamese_kernel,
        out_shape=jax.ShapeDtypeStruct((B, 1), jnp.float32),
        grid_spec=grid_spec,
        compiler_params=pltpu.CompilerParams(
            # Single axis is the D-reduction -> must stay "arbitrary".
            dimension_semantics=("arbitrary",),
            # Explicit VMEM budget so one binary is safe on v7x (64 MiB phys)
            # as well as v5e/v6e (128 MiB).
            vmem_limit_bytes=32 * 1024 * 1024,
        ),
    )(x, w_fold, b_fold, wc_row, bc)


if __name__ == "__main__":
    # Small shapes consistent with the module: two RGB images per call.
    B, C, H, W = 2, 3, 16, 16
    D = C * H * W
    F = 32  # synthetic backbone out_features (classifier input dim)

    key = jax.random.PRNGKey(0)
    k1, k2, k3, k4, k5, k6 = jax.random.split(key, 6)

    img1 = jax.random.uniform(k1, (B, C, H, W), dtype=jnp.float32)
    img2 = jax.random.uniform(k2, (B, C, H, W), dtype=jnp.float32)

    # Preprocess stats (ImageNet-style per-channel normalization).
    mean = jnp.array([0.485, 0.456, 0.406], dtype=jnp.float32)
    std = jnp.array([0.229, 0.224, 0.225], dtype=jnp.float32)

    # Deterministic synthetic parameters.
    w_backbone = jax.random.normal(k3, (D, F), dtype=jnp.float32) * 0.02
    b_backbone = jax.random.normal(k4, (F,), dtype=jnp.float32) * 0.02
    w_cls = jax.random.normal(k5, (F,), dtype=jnp.float32) * 0.1
    b_cls = jax.random.normal(k6, (1,), dtype=jnp.float32) * 0.1

    out = siamese_forward(img1, img2, mean, std,
                          w_backbone, b_backbone, w_cls, b_cls)
    out = jax.block_until_ready(out)

    # Pure-JAX reference check (matches the PyTorch forward semantics).
    def ref(i1, i2):
        def backbone(x):
            xn = (x - mean[None, :, None, None]) / std[None, :, None, None]
            return xn.reshape(B, D) @ w_backbone + b_backbone
        d = jnp.abs(jax.nn.sigmoid(backbone(i1)) - jax.nn.sigmoid(backbone(i2)))
        return d @ w_cls.reshape(F, 1) + b_cls.reshape(1, 1)

    expected = ref(img1, img2)
    assert out.shape == (B, 1)
    assert jnp.allclose(out, expected, atol=1e-4, rtol=1e-4), (out, expected)
    print("KERNEL_OK")
</pallas_src>

<mosaic_0001>
module attributes {stable_mosaic.version = 11 : i64} {
  func.func @siamese_kernel(%arg0: i32, %arg1: memref<4x256xf32, #tpu.memory_space<vmem>>, %arg2: memref<256x32xf32, #tpu.memory_space<vmem>>, %arg3: memref<1x32xf32, #tpu.memory_space<vmem>>, %arg4: memref<1x32xf32, #tpu.memory_space<vmem>>, %arg5: memref<1x1xf32, #tpu.memory_space<smem>>, %arg6: memref<2x1xf32, #tpu.memory_space<vmem>>, %arg7: memref<4x32xf32, #tpu.memory_space<vmem>>) attributes {dimension_semantics = [#tpu.dimension_semantics<arbitrary>], iteration_bounds = array<i64: 3>, scalar_prefetch = 0 : i64, scratch_operands = 1 : i64, tpu.core_type = #tpu.core_type<tc>, window_params = [{transform_indices = @transform_0, window_bounds = array<i64: 4, 256>}, {transform_indices = @transform_1, window_bounds = array<i64: 256, 32>}, {pipeline_mode = #tpu.pipeline_mode<synchronous>, transform_indices = @transform_2, window_bounds = array<i64: 1, 32>}, {pipeline_mode = #tpu.pipeline_mode<synchronous>, transform_indices = @transform_3, window_bounds = array<i64: 1, 32>}, {transform_indices = @transform_4, window_bounds = array<i64: 1, 1>}, {pipeline_mode = #tpu.pipeline_mode<synchronous>, transform_indices = @transform_5, window_bounds = array<i64: 2, 1>}]} {
    %c0_i32 = arith.constant 0 : i32
    %0 = arith.cmpi eq, %arg0, %c0_i32 : i32
    %1 = arith.extui %0 : i1 to i32
    %c0_i32_0 = arith.constant 0 : i32
    %2 = arith.cmpi ne, %1, %c0_i32_0 : i32
    scf.if %2 {
      %cst_9 = arith.constant 0.000000e+00 : f32
      %12 = vector.broadcast %cst_9 : f32 to vector<4x32xf32>
      %c0_10 = arith.constant 0 : index
      %c0_11 = arith.constant 0 : index
      %13 = vector.load %arg7[%c0_10, %c0_11] : memref<4x32xf32, #tpu.memory_space<vmem>>, vector<4x32xf32>
      tpu.vector_store %arg7[%c0_10, %c0_11], %12 {strides = array<i32>} : memref<4x32xf32, #tpu.memory_space<vmem>>, vector<4x32xf32>,
    } else {
    }
    %c0 = arith.constant 0 : index
    %c0_1 = arith.constant 0 : index
    %3 = vector.load %arg7[%c0, %c0_1] : memref<4x32xf32, #tpu.memory_space<vmem>>, vector<4x32xf32>
    %c0_2 = arith.constant 0 : index
    %c0_3 = arith.constant 0 : index
    %4 = vector.load %arg1[%c0_2, %c0_3] : memref<4x256xf32, #tpu.memory_space<vmem>>, vector<4x256xf32>
    %c0_4 = arith.constant 0 : index
    %c0_5 = arith.constant 0 : index
    %5 = vector.load %arg2[%c0_4, %c0_5] : memref<256x32xf32, #tpu.memory_space<vmem>>, vector<256x32xf32>
    %cst = arith.constant dense<0.000000e+00> : vector<4x32xf32>
    %6 = tpu.matmul %4, %5, %cst {dimension_numbers = #tpu.dot_dimension_numbers<[1], [0], [0], [1], [0, 0, 1, 1], [], []>} : vector<4x256xf32>, vector<256x32xf32>, vector<4x32xf32> -> vector<4x32xf32>
    %7 = arith.addf %3, %6 : vector<4x32xf32>
    %c0_6 = arith.constant 0 : index
    %c0_7 = arith.constant 0 : index
    %8 = vector.load %arg7[%c0_6, %c0_7] : memref<4x32xf32, #tpu.memory_space<vmem>>, vector<4x32xf32>
    tpu.vector_store %arg7[%c0_6, %c0_7], %7 {strides = array<i32>} : memref<4x32xf32, #tpu.memory_space<vmem>>, vector<4x32xf32>,
    %c2_i32 = arith.constant 2 : i32
    %9 = arith.cmpi eq, %arg0, %c2_i32 : i32
    %10 = arith.extui %9 : i1 to i32
    %c0_i32_8 = arith.constant 0 : i32
    %11 = arith.cmpi ne, %10, %c0_i32_8 : i32
    scf.if %11 {
      %c0_9 = arith.constant 0 : index
      %c0_10 = arith.constant 0 : index
      %12 = vector.load %arg7[%c0_9, %c0_10] : memref<4x32xf32, #tpu.memory_space<vmem>>, vector<4x32xf32>
      %c0_11 = arith.constant 0 : index
      %c0_12 = arith.constant 0 : index
      %13 = vector.load %arg3[%c0_11, %c0_12] : memref<1x32xf32, #tpu.memory_space<vmem>>, vector<1x32xf32>
      %14 = vector.broadcast %13 : vector<1x32xf32> to vector<4x32xf32>
      %15 = arith.addf %12, %14 : vector<4x32xf32>
      %16 = arith.negf %15 : vector<4x32xf32>
      %17 = math.exp %16 : vector<4x32xf32>
      %cst_13 = arith.constant 1.000000e+00 : f32
      %18 = vector.broadcast %cst_13 : f32 to vector<4x32xf32>
      %19 = arith.addf %18, %17 : vector<4x32xf32>
      %20 = arith.divf %18, %19 : vector<4x32xf32>
      %21 = vector.extract_strided_slice %20 {offsets = [0, 0], sizes = [2, 32], strides = [1, 1]} : vector<4x32xf32> to vector<2x32xf32>
      %22 = vector.extract_strided_slice %20 {offsets = [2, 0], sizes = [2, 32], strides = [1, 1]} : vector<4x32xf32> to vector<2x32xf32>
      %23 = arith.subf %21, %22 : vector<2x32xf32>
      %24 = math.absf %23 : vector<2x32xf32>
      %c0_14 = arith.constant 0 : index
      %c0_15 = arith.constant 0 : index
      %25 = vector.load %arg4[%c0_14, %c0_15] : memref<1x32xf32, #tpu.memory_space<vmem>>, vector<1x32xf32>
      %26 = vector.broadcast %25 : vector<1x32xf32> to vector<2x32xf32>
      %27 = arith.mulf %24, %26 : vector<2x32xf32>
      %cst_16 = arith.constant dense<0.000000e+00> : vector<2xf32>
      %28 = vector.multi_reduction <add>, %27, %cst_16 [1] : vector<2x32xf32> to vector<2xf32>
      %29 = vector.shape_cast %28 : vector<2xf32> to vector<2x1xf32>
      %c0_17 = arith.constant 0 : index
      %c0_18 = arith.constant 0 : index
      %30 = memref.load %arg5[%c0_17, %c0_18] : memref<1x1xf32, #tpu.memory_space<smem>>
      %31 = vector.broadcast %30 : f32 to vector<2x1xf32>
      %32 = arith.addf %29, %31 : vector<2x1xf32>
      %c0_19 = arith.constant 0 : index
      %c0_20 = arith.constant 0 : index
      %33 = vector.load %arg6[%c0_19, %c0_20] : memref<2x1xf32, #tpu.memory_space<vmem>>, vector<2x1xf32>
      tpu.vector_store %arg6[%c0_19, %c0_20], %32 {strides = array<i32>} : memref<2x1xf32, #tpu.memory_space<vmem>>, vector<2x1xf32>,
    } else {
    }
    return
  }
  func.func @transform_0(%arg0: i32) -> (i32, i32) {
    %c0_i32 = arith.constant 0 : i32
    %c0_i32_0 = arith.constant 0 : i32
    return %c0_i32, %arg0 : i32, i32
  }
  func.func @transform_1(%arg0: i32) -> (i32, i32) {
    %c0_i32 = arith.constant 0 : i32
    %c0_i32_0 = arith.constant 0 : i32
    return %arg0, %c0_i32 : i32, i32
  }
  func.func @transform_2(%arg0: i32) -> (i32, i32) {
    %c0_i32 = arith.constant 0 : i32
    %c0_i32_0 = arith.constant 0 : i32
    %c0_i32_1 = arith.constant 0 : i32
    return %c0_i32, %c0_i32_0 : i32, i32
  }
  func.func @transform_3(%arg0: i32) -> (i32, i32) {
    %c0_i32 = arith.constant 0 : i32
    %c0_i32_0 = arith.constant 0 : i32
    %c0_i32_1 = arith.constant 0 : i32
    return %c0_i32, %c0_i32_0 : i32, i32
  }
  func.func @transform_4(%arg0: i32) -> (i32, i32) {
    %c0_i32 = arith.constant 0 : i32
    %c0_i32_0 = arith.constant 0 : i32
    %c0_i32_1 = arith.constant 0 : i32
    return %c0_i32, %c0_i32_0 : i32, i32
  }
  func.func @transform_5(%arg0: i32) -> (i32, i32) {
    %c0_i32 = arith.constant 0 : i32
    %c0_i32_0 = arith.constant 0 : i32
    %c0_i32_1 = arith.constant 0 : i32
    return %c0_i32, %c0_i32_0 : i32, i32
  }
}

</mosaic_0001>

<llo_original>
// kernel: tpu_custom_call.1
$region0: #{tpu_custom_call.1}
  #allocation0 [shape = 'u32[]', space=smem, size = 0x4, offset = 0x4, fixed_abs, tag = 'smem constant byte address 0x4 - core index']
  #allocation1 [shape = 'u32[144,128]{1,0:T(1,128)}', space=vmem, size = 0x12000, scoped, tag = 'internal scratch']
  #allocation2 [shape = 'f32[4,32]{1,0:T(4,128)}', space=vmem, size = 0x800, scoped, tag = 'scratch operand']
  #allocation3 [shape = 'f32[1,1]{1,0:T(1,128)S(6)}', space=smem, size = 0x200, scoped, tag = 'scoped memory for tpu_custom_call.1']
  %s0 = inlined_call_operand.vmem [shape: f32[4,768], index: 0, kind: input, shape index: {}]
  %s1 = inlined_call_operand.vmem [shape: f32[768,32], index: 1, kind: input, shape index: {}]
  %s2 = inlined_call_operand.vmem [shape: f32[1,32], index: 2, kind: input, shape index: {}]
  %s3 = inlined_call_operand.vmem [shape: f32[1,32], index: 3, kind: input, shape index: {}]
  %s4 = inlined_call_operand.<no memory space> [shape: f32[1,1], index: 4, kind: input, shape index: {}]
  %s5 = inlined_call_operand.vmem [shape: f32[2,1], index: 5, kind: output, shape index: {}]
  %s6 = sld [smem:[#allocation0]]
  $region61: #{tpu_custom_call.1} parent=0
    _
  %s8 = ssub.s32 1, %s6
  %s9 = scalar_select 0, %s8, %s6
  %10 = sst [smem:[#allocation3]] %s4
  loop: start=0, step=1, limit=5
  $region2: #{tpu_custom_call.1} parent=0 // loop_pre_header
    _
  $region3: #{tpu_custom_call.1} parent=0 // loop_header
    %s12 = sphi 0, %s16
    %p13 = scmp.ge.s32.totalorder %s12, 5
    %s22 = sphi 0, %s24
    %s25 = sphi 0, %s22
    %s26 = sphi 0, %s25
    %s42 = sphi 0, %s26
    %s48 = sphi 0, %s50
    %s51 = sphi 0, %s48
    %s52 = sphi 0, %s51
    %s68 = sphi 0, %s52
    %s72 = sphi 0, %s72
    %s74 = sphi 0, %s72
    %s75 = sphi 0, %s74
    %s89 = sphi 0, %s75
    %s93 = sphi 0, %s93
    %s95 = sphi 0, %s93
    %s96 = sphi 0, %s95
    %s110 = sphi 0, %s96
    %s114 = sphi 0, %s114
    %s116 = sphi 0, %s114
    %s117 = sphi 0, %s116
    %s131 = sphi 0, %s117
    %s135 = sphi 0, %s135
    %s137 = sphi 0, %s135
    %s138 = sphi 0, %s137
    %s152 = sphi 0, %s138
  $region4: #{tpu_custom_call.1} parent=0 // loop_header_branch
    %15 = sbr.rel (%p13) target = $region8
  $region5: #{tpu_custom_call.1} parent=0 // loop_body
    %s17 = ssub.s32 %s12, 1
    %s18 = ssub.s32 %s12, 2
    %s19 = sadd.s32 %s12, 1
    %s20 = ssub.s32 %s12, %s19
    %p21 = scmp.eq.s32.totalorder %s20, 0
    %s23 = sadd.s32 %s22, 1
    %s24 = scalar_select %p21, %s22, %s23
    %p27 = pneg %p21
    %p28 = scmp.eq.s32.totalorder %s12, 2
    %p29 = por %p27, %p28
    %p30 = scmp.ne.s32.totalorder %s22, %s25
    %p31 = scmp.eq.s32.totalorder %s12, 0
    %p32 = por %p30, %p31
    %p33 = scmp.ne.s32.totalorder %s22, %s25
    %p34 = scmp.eq.s32.totalorder %s17, 2
    %p35 = por %p33, %p34
    %p36 = scmp.ne.s32.totalorder %s25, %s26
    %p37 = scmp.eq.s32.totalorder %s17, 0
    %p38 = por %p36, %p37
    %p39 = scmp.ne.s32.totalorder %s25, %s26
    %p40 = scmp.eq.s32.totalorder %s18, 2
    %p41 = por %p39, %p40
    %p43 = scmp.ne.s32.totalorder %s26, %s42
    %p44 = scmp.eq.s32.totalorder %s18, 0
    %p45 = por %p43, %p44
    %s46 = ssub.s32 %s12, %s19
    %p47 = scmp.eq.s32.totalorder %s46, 0
    %s49 = sadd.s32 %s48, 1
    %s50 = scalar_select %p47, %s48, %s49
    %p53 = pneg %p47
    %p54 = scmp.eq.s32.totalorder %s12, 2
    %p55 = por %p53, %p54
    %p56 = scmp.ne.s32.totalorder %s48, %s51
    %p57 = scmp.eq.s32.totalorder %s12, 0
    %p58 = por %p56, %p57
    %p59 = scmp.ne.s32.totalorder %s48, %s51
    %p60 = scmp.eq.s32.totalorder %s17, 2
    %p61 = por %p59, %p60
    %p62 = scmp.ne.s32.totalorder %s51, %s52
    %p63 = scmp.eq.s32.totalorder %s17, 0
    %p64 = por %p62, %p63
    %p65 = scmp.ne.s32.totalorder %s51, %s52
    %p66 = scmp.eq.s32.totalorder %s18, 2
    %p67 = por %p65, %p66
    %p69 = scmp.ne.s32.totalorder %s52, %s68
    %p70 = scmp.eq.s32.totalorder %s18, 0
    %p71 = por %p69, %p70
    %s73 = sadd.s32 %s72, 1
    %p76 = scmp.eq.s32.totalorder %s12, 2
    %p77 = scmp.ne.s32.totalorder %s72, %s74
    %p78 = scmp.eq.s32.totalorder %s12, 0
    %p79 = por %p77, %p78
    %p80 = scmp.ne.s32.totalorder %s72, %s74
    %p81 = scmp.eq.s32.totalorder %s17, 2
    %p82 = por %p80, %p81
    %p83 = scmp.ne.s32.totalorder %s74, %s75
    %p84 = scmp.eq.s32.totalorder %s17, 0
    %p85 = por %p83, %p84
    %p86 = scmp.ne.s32.totalorder %s74, %s75
    %p87 = scmp.eq.s32.totalorder %s18, 2
    %p88 = por %p86, %p87
    %p90 = scmp.ne.s32.totalorder %s75, %s89
    %p91 = scmp.eq.s32.totalorder %s18, 0
    %p92 = por %p90, %p91
    %s94 = sadd.s32 %s93, 1
    %p97 = scmp.eq.s32.totalorder %s12, 2
    %p98 = scmp.ne.s32.totalorder %s93, %s95
    %p99 = scmp.eq.s32.totalorder %s12, 0
    %p100 = por %p98, %p99
    %p101 = scmp.ne.s32.totalorder %s93, %s95
    %p102 = scmp.eq.s32.totalorder %s17, 2
    %p103 = por %p101, %p102
    %p104 = scmp.ne.s32.totalorder %s95, %s96
    %p105 = scmp.eq.s32.totalorder %s17, 0
    %p106 = por %p104, %p105
    %p107 = scmp.ne.s32.totalorder %s95, %s96
    %p108 = scmp.eq.s32.totalorder %s18, 2
    %p109 = por %p107, %p108
    %p111 = scmp.ne.s32.totalorder %s96, %s110
    %p112 = scmp.eq.s32.totalorder %s18, 0
    %p113 = por %p111, %p112
    %s115 = sadd.s32 %s114, 1
    %p118 = scmp.eq.s32.totalorder %s12, 2
    %p119 = scmp.ne.s32.totalorder %s114, %s116
    %p120 = scmp.eq.s32.totalorder %s12, 0
    %p121 = por %p119, %p120
    %p122 = scmp.ne.s32.totalorder %s114, %s116
    %p123 = scmp.eq.s32.totalorder %s17, 2
    %p124 = por %p122, %p123
    %p125 = scmp.ne.s32.totalorder %s116, %s117
    %p126 = scmp.eq.s32.totalorder %s17, 0
    %p127 = por %p125, %p126
    %p128 = scmp.ne.s32.totalorder %s116, %s117
    %p129 = scmp.eq.s32.totalorder %s18, 2
    %p130 = por %p128, %p129
    %p132 = scmp.ne.s32.totalorder %s117, %s131
    %p133 = scmp.eq.s32.totalorder %s18, 0
    %p134 = por %p132, %p133
    %s136 = sadd.s32 %s135, 1
    %p139 = scmp.eq.s32.totalorder %s12, 2
    %p140 = scmp.ne.s32.totalorder %s135, %s137
    %p141 = scmp.eq.s32.totalorder %s12, 0
    %p142 = por %p140, %p141
    %p143 = scmp.ne.s32.totalorder %s135, %s137
    %p144 = scmp.eq.s32.totalorder %s17, 2
    %p145 = por %p143, %p144
    %p146 = scmp.ne.s32.totalorder %s137, %s138
    %p147 = scmp.eq.s32.totalorder %s17, 0
    %p148 = por %p146, %p147
    %p149 = scmp.ne.s32.totalorder %s137, %s138
    %p150 = scmp.eq.s32.totalorder %s18, 2
    %p151 = por %p149, %p150
    %p153 = scmp.ne.s32.totalorder %s138, %s152
    %p154 = scmp.eq.s32.totalorder %s18, 0
    %p155 = por %p153, %p154
    %p156 = scmp.le.s32.totalorder 1, %s12
    %p157 = scmp.lt.s32.totalorder %s12, 4
    %p158 = pnand %p156, %p157
    %p159 = pneg %p158
    // Predicated region
    $region9: #{tpu_custom_call.1} parent=5 // pred_check
      _
    $region10: #{tpu_custom_call.1} parent=5 // pred_check_branch
      %161 = sbr.rel (%p158) target = $region12
    $region11: #{tpu_custom_call.1} parent=5 // pred_region
      %s162 = ssub.s32 %s12, 1
      // Predicated region
      $region13: #{tpu_custom_call.1} parent=11 // pred_check
        %p163 = pneg %p85
      $region14: #{tpu_custom_call.1} parent=11 // pred_check_branch
        %165 = sbr.rel (%p163) target = $region16
      $region15: #{tpu_custom_call.1} parent=11 // pred_region
        _
      $region16: #{tpu_custom_call.1} parent=11 // pred_fallthru
        _
      // Predicated region
      $region17: #{tpu_custom_call.1} parent=11 // pred_check
        %p166 = pneg %p106
      $region18: #{tpu_custom_call.1} parent=11 // pred_check_branch
        %168 = sbr.rel (%p166) target = $region20
      $region19: #{tpu_custom_call.1} parent=11 // pred_region
        _
      $region20: #{tpu_custom_call.1} parent=11 // pred_fallthru
        _
      // Predicated region
      $region21: #{tpu_custom_call.1} parent=11 // pred_check
        %p169 = pneg %p127
      $region22: #{tpu_custom_call.1} parent=11 // pred_check_branch
        %171 = sbr.rel (%p169) target = $region24
      $region23: #{tpu_custom_call.1} parent=11 // pred_region
        _
      $region24: #{tpu_custom_call.1} parent=11 // pred_fallthru
        _
    $region12: #{tpu_custom_call.1} parent=5 // pred_fallthru
      _
    %p172 = scmp.lt.s32.totalorder %s12, 3
    // Predicated region
    $region25: #{tpu_custom_call.1} parent=5 // pred_check
      %p173 = pneg %p172
    $region26: #{tpu_custom_call.1} parent=5 // pred_check_branch
      %175 = sbr.rel (%p173) target = $region28
    $region27: #{tpu_custom_call.1} parent=5 // pred_region
      // Predicated region
      $region29: #{tpu_custom_call.1} parent=27 // pred_check
        %p176 = pneg %p32
      $region30: #{tpu_custom_call.1} parent=27 // pred_check_branch
        %178 = sbr.rel (%p176) target = $region32
      $region31: #{tpu_custom_call.1} parent=27 // pred_region
        %s179 = smul.u32 2, %s12
        %p180 = scmp.lt.s32.totalorder %s179, 5
        %s181 = scalar_select %p180, %s179, 5
        %s182 = smul.addr %s181, 4
        %s183 = scalar_lea.vmem %s0, %s182
        %s184 = smul.u32 2, %s12
      $region32: #{tpu_custom_call.1} parent=27 // pred_fallthru
        _
      // Predicated region
      $region33: #{tpu_custom_call.1} parent=27 // pred_check
        %p185 = pneg %p58
      $region34: #{tpu_custom_call.1} parent=27 // pred_check_branch
        %187 = sbr.rel (%p185) target = $region36
      $region35: #{tpu_custom_call.1} parent=27 // pred_region
        %s188 = smul.u32 32, %s12
        %p189 = scmp.lt.s32.totalorder %s188, 95
        %s190 = scalar_select %p189, %s188, 95
        %s191 = smul.addr %s190, 8
        %s192 = scalar_lea.vmem %s1, %s191
        %s193 = smul.u32 32, %s12
      $region36: #{tpu_custom_call.1} parent=27 // pred_fallthru
        _
    $region28: #{tpu_custom_call.1} parent=5 // pred_fallthru
      _
    %p194 = scmp.le.s32.totalorder 1, %s12
    %p195 = scmp.lt.s32.totalorder %s12, 4
    %p196 = pnand %p194, %p195
    %p197 = pneg %p196
    // Predicated region
    $region37: #{tpu_custom_call.1} parent=5 // pred_check
      _
    $region38: #{tpu_custom_call.1} parent=5 // pred_check_branch
      %199 = sbr.rel (%p196) target = $region40
    $region39: #{tpu_custom_call.1} parent=5 // pred_region
      %s200 = ssub.s32 %s12, 1
      %s201 = smul.u32 2, %s17
      %p202 = scmp.lt.s32.totalorder %s201, 5
      %s203 = scalar_select %p202, %s201, 5
      %s204 = smul.addr %s203, 4
      %s205 = scalar_lea.vmem %s0, %s204
      %p206 = pneg %p38
      %p207 = pneg %p35
      %s208 = smul.u32 32, %s17
      %p209 = scmp.lt.s32.totalorder %s208, 95
      %s210 = scalar_select %p209, %s208, 95
      %s211 = smul.addr %s210, 8
      %s212 = scalar_lea.vmem %s1, %s211
      %p213 = pneg %p64
      %p214 = pneg %p61
      %p215 = pneg %p85
      %p216 = pneg %p82
      %p217 = pneg %p106
      %p218 = pneg %p103
      %p219 = pneg %p127
      %p220 = pneg %p124
      %p221 = pneg %p148
      %p222 = pneg %p145
      %s223 = smul.u32 2, %s17
      %p224 = scmp.lt.s32.totalorder %s223, 5
      %s225 = scalar_select %p224, %s223, 5
      %s226 = smul.addr %s225, 4
      %s227 = scalar_lea.vmem %s0, %s226
      %s228 = smul.u32 2, %s17
      %s229 = smul.u32 32, %s17
      %p230 = scmp.lt.s32.totalorder %s229, 95
      %s231 = scalar_select %p230, %s229, 95
      %s232 = smul.addr %s231, 8
      %s233 = scalar_lea.vmem %s1, %s232
      %s234 = smul.u32 32, %s17
      %p235 = scmp.eq.s32.totalorder %s17, 0
      // Predicated region
      $region41: #{tpu_custom_call.1} parent=39 // pred_check
        %p236 = pneg %p235
      $region42: #{tpu_custom_call.1} parent=39 // pred_check_branch
        %238 = sbr.rel (%p236) target = $region44
      $region43: #{tpu_custom_call.1} parent=39 // pred_region
        %vm239 = vcmask 257024
        %240 = vst.msk [vmem:[#allocation2] sm:$0xf] %vm239, 0.0
      $region44: #{tpu_custom_call.1} parent=39 // pred_fallthru
        _
      %v241 = vld [vmem:[#allocation2] sm:$0xf]
      %v242 = vld [vmem:[%s227] sm:$0xff]
      %v243 = vld [vmem:[%s233] sm:$0xff]
      %v244 = vld [vmem:[%s233 + $0x8] sm:$0xff]
      %v245 = vld [vmem:[%s233 + $0x10] sm:$0xff]
      %v246 = vld [vmem:[%s233 + $0x18] sm:$0xff]
      %v247 = vld [vmem:[%s233 + $0x20] sm:$0xff]
      %v248 = vld [vmem:[%s233 + $0x28] sm:$0xff]
      %v249 = vld [vmem:[%s233 + $0x30] sm:$0xff]
      %v250 = vld [vmem:[%s233 + $0x38] sm:$0xff]
      %v251 = vld [vmem:[%s233 + $0x40] sm:$0xff]
      %v252 = vld [vmem:[%s233 + $0x48] sm:$0xff]
      %v253 = vld [vmem:[%s233 + $0x50] sm:$0xff]
      %v254 = vld [vmem:[%s233 + $0x58] sm:$0xff]
      %v255 = vld [vmem:[%s233 + $0x60] sm:$0xff]
      %v256 = vld [vmem:[%s233 + $0x68] sm:$0xff]
      %v257 = vld [vmem:[%s233 + $0x70] sm:$0xff]
      %v258 = vld [vmem:[%s233 + $0x78] sm:$0xff]
      %v259 = vld [vmem:[%s233 + $0x80] sm:$0xff]
      %v260 = vld [vmem:[%s233 + $0x88] sm:$0xff]
      %v261 = vld [vmem:[%s233 + $0x90] sm:$0xff]
      %v262 = vld [vmem:[%s233 + $0x98] sm:$0xff]
      %v263 = vld [vmem:[%s233 + $0xa0] sm:$0xff]
      %v264 = vld [vmem:[%s233 + $0xa8] sm:$0xff]
      %v265 = vld [vmem:[%s233 + $0xb0] sm:$0xff]
      %v266 = vld [vmem:[%s233 + $0xb8] sm:$0xff]
      %v267 = vld [vmem:[%s233 + $0xc0] sm:$0xff]
      %v268 = vld [vmem:[%s233 + $0xc8] sm:$0xff]
      %v269 = vld [vmem:[%s233 + $0xd0] sm:$0xff]
      %v270 = vld [vmem:[%s233 + $0xd8] sm:$0xff]
      %v271 = vld [vmem:[%s233 + $0xe0] sm:$0xff]
      %v272 = vld [vmem:[%s233 + $0xe8] sm:$0xff]
      %v273 = vld [vmem:[%s233 + $0xf0] sm:$0xff]
      %v274 = vld [vmem:[%s233 + $0xf8] sm:$0xff]
      %v276 = vcombine.high %v242, %v242
      %278 = vmatprep.subr.mxu0 0.0
      %279 = vmatpush1.msra.mxu0 %v258
      %280 = vmatprep.subr.mxu0 0.0
      %281 = vmatpush1.msra.mxu0 %v257
      %282 = vmatprep.subr.mxu0 0.0
      %283 = vmatpush1.msra.mxu0 %v256
      %284 = vmatprep.subr.mxu0 0.0
      %285 = vmatpush1.msra.mxu0 %v255
      %286 = vmatprep.subr.mxu0 0.0
      %287 = vmatpush1.msra.mxu0 %v254
      %288 = vmatprep.subr.mxu0 0.0
      %289 = vmatpush1.msra.mxu0 %v253
      %290 = vmatprep.subr.mxu0 0.0
      %291 = vmatpush1.msra.mxu0 %v252
      %292 = vmatprep.subr.mxu0 0.0
      %293 = vmatpush1.msra.mxu0 %v251
      %294 = vmatprep.subr.mxu0 0.0
      %295 = vmatpush1.msra.mxu0 %v250
      %296 = vmatprep.subr.mxu0 0.0
      %297 = vmatpush1.msra.mxu0 %v249
      %298 = vmatprep.subr.mxu0 0.0
      %299 = vmatpush1.msra.mxu0 %v248
      %300 = vmatprep.subr.mxu0 0.0
      %301 = vmatpush1.msra.mxu0 %v247
      %302 = vmatprep.subr.mxu0 0.0
      %303 = vmatpush1.msra.mxu0 %v246
      %304 = vmatprep.subr.mxu0 0.0
      %305 = vmatpush1.msra.mxu0 %v245
      %306 = vmatprep.subr.mxu0 0.0
      %307 = vmatpush1.msra.mxu0 %v244
      %308 = vmatprep.subr.mxu0 0.0
      %309 = vmatpush1.msra.mxu0 %v243
      %310 = vmatprep.subr.mxu0 0.0
      %311 = vmatpush2.msra.mxu0 %v274
      %312 = vmatprep.subr.mxu0 0.0
      %313 = vmatpush2.msra.mxu0 %v273
      %314 = vmatprep.subr.mxu0 0.0
      %315 = vmatpush2.msra.mxu0 %v272
      %316 = vmatprep.subr.mxu0 0.0
      %317 = vmatpush2.msra.mxu0 %v271
      %318 = vmatprep.subr.mxu0 0.0
      %319 = vmatpush2.msra.mxu0 %v270
      %320 = vmatprep.subr.mxu0 0.0
      %321 = vmatpush2.msra.mxu0 %v269
      %322 = vmatprep.subr.mxu0 0.0
      %323 = vmatpush2.msra.mxu0 %v268
      %324 = vmatprep.subr.mxu0 0.0
      %325 = vmatpush2.msra.mxu0 %v267
      %326 = vmatprep.subr.mxu0 0.0
      %327 = vmatpush2.msra.mxu0 %v266
      %328 = vmatprep.subr.mxu0 0.0
      %329 = vmatpush2.msra.mxu0 %v265
      %330 = vmatprep.subr.mxu0 0.0
      %331 = vmatpush2.msra.mxu0 %v264
      %332 = vmatprep.subr.mxu0 0.0
      %333 = vmatpush2.msra.mxu0 %v263
      %334 = vmatprep.subr.mxu0 0.0
      %335 = vmatpush2.msra.mxu0 %v262
      %336 = vmatprep.subr.mxu0 0.0
      %337 = vmatpush2.msra.mxu0 %v261
      %338 = vmatprep.subr.mxu0 0.0
      %339 = vmatpush2.msra.mxu0 %v260
      %340 = vmatprep.subr.mxu0 0.0
      %341 = vmatpush2.msra.mxu0 %v259
      %342 = vmatprep.mubr.f32.mxu0 %v276
      %343 = vmatmul.mubr.f32.gmra.mxu0 %v242
      %v344 = vpop.f32.mrf.mxu0
      %v345 = vadd.f32 0.0, %v344
      %v346 = vpop.f32.mrf.mxu0
      %347 = vdwg.mxu0
      %v348 = vadd.f32 %v241, %v345
      %vm349 = vcmask 257024
      %350 = vst.msk [vmem:[#allocation2] sm:$0xf] %vm349, %v348
      %p351 = scmp.eq.s32.totalorder %s17, 2
      // Predicated region
      $region45: #{tpu_custom_call.1} parent=39 // pred_check
        %p352 = pneg %p351
      $region46: #{tpu_custom_call.1} parent=39 // pred_check_branch
        %354 = sbr.rel (%p352) target = $region48
      $region47: #{tpu_custom_call.1} parent=39 // pred_region
        %v355 = vld [vmem:[#allocation2] sm:$0xf]
        %v356 = vld [vmem:[%s2] sm:$0x1]
        %v358 = vlaneseq
        %v359 = vshrl.u32 %v358, 7
        %v360 = vsub.s32 0, %v359
        %v361 = vrot.slane %v356, %v360
        %v363 = vadd.f32 %v355, %v361
        %v364 = vxor.u32 %v363, 2147483648
        %v365 = vmul.f32 %v364, 1.442695
        %v366 = vpow.pop %v365
        %v367 = vadd.f32 %v366, 1.0
        %v368 = vrcp.pop %v367
        %v369 = vmul.f32 1.0, %v368
        %v371 = vrot.slane %v369, 2
        %v373 = vsub.f32 %v369, %v371
        %v374 = vand.u32 2147483647, %v373
        %v375 = vld [vmem:[%s3] sm:$0x1]
        %v377 = vlaneseq
        %v378 = vshrl.u32 %v377, 7
        %v379 = vsub.s32 0, %v378
        %v380 = vrot.slane %v375, %v379
        %v382 = vmul.f32 %v374, %v380
        %vm383 = vcmask 254976
        %v384 = vsel %vm383, %v382, 0.0
        %385 = vadd.xlane.f32.xlu0 %v384
        %v386 = vpop.xlane.xlu0 %385
        %s387 = sld [smem:[#allocation3]]
        %v388 = vstv %s387
        %v389 = vadd.f32 %v386, %v388
        %vm390 = vcmask 1024
        %391 = vst.msk [vmem:[%s5] sm:$0x3] %vm390, %v389
      $region48: #{tpu_custom_call.1} parent=39 // pred_fallthru
        _
      // Predicated region
      $region49: #{tpu_custom_call.1} parent=39 // pred_check
        %p392 = pneg %p145
      $region50: #{tpu_custom_call.1} parent=39 // pred_check_branch
        %394 = sbr.rel (%p392) target = $region52
      $region51: #{tpu_custom_call.1} parent=39 // pred_region
        _
      $region52: #{tpu_custom_call.1} parent=39 // pred_fallthru
        _
      // Predicated region
      $region53: #{tpu_custom_call.1} parent=39 // pred_check
        %p395 = pneg %p145
      $region54: #{tpu_custom_call.1} parent=39 // pred_check_branch
        %397 = sbr.rel (%p395) target = $region56
      $region55: #{tpu_custom_call.1} parent=39 // pred_region
        _
      $region56: #{tpu_custom_call.1} parent=39 // pred_fallthru
        _
    $region40: #{tpu_custom_call.1} parent=5 // pred_fallthru
      _
    %p398 = scmp.le.s32.totalorder 2, %s12
    // Predicated region
    $region57: #{tpu_custom_call.1} parent=5 // pred_check
      %p399 = pneg %p398
    $region58: #{tpu_custom_call.1} parent=5 // pred_check_branch
      %401 = sbr.rel (%p399) target = $region60
    $region59: #{tpu_custom_call.1} parent=5 // pred_region
      %s402 = ssub.s32 %s12, 2
    $region60: #{tpu_custom_call.1} parent=5 // pred_fallthru
      _
  $region6: #{tpu_custom_call.1} parent=0 // loop_footer
    %s16 = sadd.s32 1, %s12
  $region7: #{tpu_custom_call.1} parent=0 // loop_footer_branch
    %11 = sbr.rel target = $region3
  $region8: #{tpu_custom_call.1} parent=0 // loop_exit
    _

</llo_original>
